<compile_context>
chip_gen: v7x
topology: tpu7x:2x2x1
jax: 0.10.0
libtpu: 0.0.40
codegen_flags: <defaults>
</compile_context>

<pallas_src>
import functools

import jax
import jax.numpy as jnp
from jax.experimental import pallas as pl
from jax.experimental.pallas import tpu as pltpu

_LANE = 128
_MIN_SPLIT = 16384  # lanes; below this one block is fine even on dual-TC v7x


def _round_up(x, m):
    return ((x + m - 1) // m) * m


def _final_linear_kernel(wt_ref, a_ref, o_ref):
    """o[d, :] = sum_h wt[h, d] * a[h, :]   (VPU multiply + sublane reduce, no MXU).

    wt_ref: VMEM (H, out_dim)  weight column(s), resident across the whole grid
    a_ref:  VMEM (H, TN)       lane-dense activation tile (A transposed)
    o_ref:  VMEM (out_dim, TN) lane-dense output tile (out transposed)
    """
    H, out_dim = wt_ref.shape
    a = a_ref[...].astype(jnp.float32)            # (H, TN)
    wt = wt_ref[...].astype(jnp.float32)          # (H, out_dim)
    for d in range(out_dim):                      # static unroll; out_dim is typically 1
        w_col = wt[:, d:d + 1]                    # (H, 1) lane-broadcast column
        o_ref[d:d + 1, :] = jnp.sum(a * w_col, axis=0,
                                    keepdims=True).astype(o_ref.dtype)


@functools.partial(jax.jit, static_argnames=("tile_n",))
def gpt_final_linear_t(a_t, weight_t, *, tile_n=65536):
    """Bias-free final linear layer, transposed layout.

    a_t:      (H, N)        activation matrix stored transposed (N on lanes)
    weight_t: (H, out_dim)  == nn.Linear(H, out_dim, bias=False).weight.T
    returns   (out_dim, N)  == (A @ W.T).T
    """
    H, N = a_t.shape
    H_w, out_dim = weight_t.shape
    assert H == H_w, "weight inner dim must match activation width"

    if N % _LANE == 0:
        # Lane-aligned N (the normal path: stored activations are padded at init).
        tn = min(tile_n, N)
        if pl.cdiv(N, tn) == 1 and N >= 2 * _MIN_SPLIT:
            # Ensure >= 2 grid steps so the "parallel" grid axis can shard
            # across both v7x TensorCores (no effect on single-TC v5e/v6e).
            tn = _round_up(pl.cdiv(N, 2), _LANE)
    else:
        # Unaligned N: full-extent single block if it fits (valid block shape),
        # otherwise lane-aligned tiles with a ragged (masked-write) last block.
        # Safe here because the computation is strictly per-lane.
        tn = N if N <= tile_n else tile_n
    grid_n = pl.cdiv(N, tn)

    return pl.pallas_call(
        _final_linear_kernel,
        out_shape=jax.ShapeDtypeStruct((out_dim, N), a_t.dtype),
        grid_spec=pltpu.PrefetchScalarGridSpec(
            num_scalar_prefetch=0,
            grid=(grid_n,),
            in_specs=[
                # Tiny weight column stays resident in VMEM across the grid.
                pl.BlockSpec((H, out_dim), lambda i: (0, 0)),
                # Lane-dense A.T column tile.
                pl.BlockSpec((H, tn), lambda i: (0, i)),
            ],
            out_specs=pl.BlockSpec((out_dim, tn), lambda i: (0, i)),
        ),
        compiler_params=pltpu.CompilerParams(
            dimension_semantics=("parallel",),
        ),
    )(weight_t, a_t)


class GPTPallas:
    """JAX/Pallas port of the GPT-PINN module's forward pass."""

    def __init__(self, layers, activation_fns, initial_c,
                 activation_resid, activation_IC, activation_BC):
        self.layers = layers
        # list of H callables, each: (N, layers[0]) -> (N, 1)   (pre-trained PINNs)
        self.activation = activation_fns
        # linears[0].weight = ones(layers[1], layers[0]) in the torch module;
        # never used in forward(), kept for fidelity.
        self.w0 = jnp.ones((layers[1], layers[0]), jnp.float32)
        # linears[-1].weight = initial_c, shape (out_dim, H); kernel wants it as
        # a (H, out_dim) column.
        self.c = jnp.asarray(initial_c, jnp.float32)
        self.c_t = self.c.T

        # Store the three precomputed activation matrices transposed (H, N),
        # each zero-padded to a lane-aligned width, concatenated along N so all
        # three datatype branches are served by ONE fused pallas_call.
        segs = []
        self._segments = {}
        offset = 0
        for name, act in (("residual", activation_resid),
                          ("initial", activation_IC),
                          ("boundary", activation_BC)):
            a_t = jnp.asarray(act, jnp.float32).T          # (H, N)
            n = a_t.shape[1]
            n_pad = _round_up(n, _LANE)
            if n_pad != n:
                a_t = jnp.pad(a_t, ((0, 0), (0, n_pad - n)))
            segs.append(a_t)
            self._segments[name] = (offset, n)
            offset += n_pad
        self._a_all_t = jnp.concatenate(segs, axis=1)      # (H, N_total_padded)
        self._combined = None                              # lazily cached fused output

    def refresh(self):
        """Invalidate the cached fused output (call if self.c / self.c_t change)."""
        self._combined = None

    def _combined_output(self):
        if self._combined is None:
            self._combined = gpt_final_linear_t(self._a_all_t, self.c_t)
        return self._combined

    def forward(self, datatype=None, test_data=None):
        if test_data is not None:
            # torch: a = cat([P[i](test_data) for i], dim=1)  -> (N, H)
            # here: build A.T (H, N) directly by stacking rows (free transpose).
            rows = [self.activation[i](test_data).reshape(1, -1)
                    for i in range(self.layers[1])]
            a_t = jnp.concatenate(rows, axis=0).astype(jnp.float32)
            n = a_t.shape[1]
            n_pad = _round_up(n, _LANE)
            if n_pad != n:                                 # one tiny pad, lane-aligns stores
                a_t = jnp.pad(a_t, ((0, 0), (0, n_pad - n)))
            out_t = gpt_final_linear_t(a_t, self.c_t)      # (out_dim, n_pad)
            return out_t[:, :n].T
        if datatype in self._segments:
            off, n = self._segments[datatype]
            out_t = self._combined_output()                # one fused launch, cached
            return out_t[:, off:off + n].T
        return None

    # TODO(synk): lossR/lossIC1BC/lossIC2/loss (MSE training objectives) are not
    # part of the forward pass and are not implemented as Pallas kernels here.


def _make_synthetic_activation(i):
    # Deterministic stand-in for the i-th pre-trained Klein-Gordon PINN:
    # maps (N, 2) collocation points (x, t) -> (N, 1).
    def fn(xt):
        x, t = xt[:, 0:1], xt[:, 1:2]
        return jnp.sin((i + 1) * x) * jnp.cos((i + 1) * t) + 0.1 * (i + 1)
    return fn


if __name__ == "__main__":
    key = jax.random.PRNGKey(0)
    layers = [2, 8, 1]          # [input dim (x,t), #pre-trained PINN activations, output]
    H = layers[1]

    # Small deterministic problem sizes.
    N_resid, N_IC, N_BC, N_test = 256, 128, 128, 96

    k1, k2, k3, k4, k5, _ = jax.random.split(key, 6)
    initial_c = jax.random.normal(k1, (layers[2], H), jnp.float32)      # linears[-1].weight
    activation_resid = jax.random.normal(k2, (N_resid, H), jnp.float32)
    activation_IC = jax.random.normal(k3, (N_IC, H), jnp.float32)
    activation_BC = jax.random.normal(k4, (N_BC, H), jnp.float32)
    test_data = jax.random.uniform(k5, (N_test, layers[0]), jnp.float32, -1.0, 1.0)

    activation_fns = [_make_synthetic_activation(i) for i in range(H)]

    model = GPTPallas(layers, activation_fns, initial_c,
                      activation_resid, activation_IC, activation_BC)

    # Run all forward branches (residual/initial/boundary share one fused launch).
    out_resid = model.forward(datatype="residual")
    out_ic = model.forward(datatype="initial")
    out_bc = model.forward(datatype="boundary")
    out_test = model.forward(test_data=test_data)
    jax.block_until_ready((out_resid, out_ic, out_bc, out_test))

    # Reference check against plain JAX (== torch nn.Linear(bias=False)).
    def ref_linear(a, w):
        return a @ w.T

    a_test = jnp.concatenate([activation_fns[i](test_data) for i in range(H)], axis=1)
    checks = [
        (out_resid, ref_linear(activation_resid, initial_c)),
        (out_ic, ref_linear(activation_IC, initial_c)),
        (out_bc, ref_linear(activation_BC, initial_c)),
        (out_test, ref_linear(a_test, initial_c)),
    ]
    for got, want in checks:
        assert got.shape == want.shape, (got.shape, want.shape)
        assert jnp.allclose(got, want, atol=1e-5, rtol=1e-5)

    print("KERNEL_OK")
</pallas_src>

<mosaic_0001>
module attributes {stable_mosaic.version = 11 : i64} {
  func.func @_final_linear_kernel(%arg0: i32, %arg1: memref<8x1xf32, #tpu.memory_space<vmem>>, %arg2: memref<8x512xf32, #tpu.memory_space<vmem>>, %arg3: memref<1x512xf32, #tpu.memory_space<vmem>>) attributes {dimension_semantics = [#tpu.dimension_semantics<parallel>], iteration_bounds = array<i64: 1>, scalar_prefetch = 0 : i64, scratch_operands = 0 : i64, tpu.core_type = #tpu.core_type<tc>, window_params = [{pipeline_mode = #tpu.pipeline_mode<synchronous>, transform_indices = @transform_0, window_bounds = array<i64: 8, 1>}, {transform_indices = @transform_1, window_bounds = array<i64: 8, 512>}, {transform_indices = @transform_2, window_bounds = array<i64: 1, 512>}]} {
    %c0 = arith.constant 0 : index
    %c0_0 = arith.constant 0 : index
    %0 = vector.load %arg2[%c0, %c0_0] : memref<8x512xf32, #tpu.memory_space<vmem>>, vector<8x512xf32>
    %c0_1 = arith.constant 0 : index
    %c0_2 = arith.constant 0 : index
    %1 = vector.load %arg1[%c0_1, %c0_2] : memref<8x1xf32, #tpu.memory_space<vmem>>, vector<8x1xf32>
    %2 = vector.broadcast %1 : vector<8x1xf32> to vector<8x512xf32>
    %3 = arith.mulf %0, %2 : vector<8x512xf32>
    %cst = arith.constant dense<0.000000e+00> : vector<512xf32>
    %4 = vector.multi_reduction <add>, %3, %cst [0] : vector<8x512xf32> to vector<512xf32>
    %5 = vector.shape_cast %4 : vector<512xf32> to vector<1x512xf32>
    %c0_3 = arith.constant 0 : index
    %c0_4 = arith.constant 0 : index
    %6 = vector.load %arg3[%c0_3, %c0_4] : memref<1x512xf32, #tpu.memory_space<vmem>>, vector<1x512xf32>
    tpu.vector_store %arg3[%c0_3, %c0_4], %5 {strides = array<i32>} : memref<1x512xf32, #tpu.memory_space<vmem>>, vector<1x512xf32>,
    return
  }
  func.func @transform_0(%arg0: i32) -> (i32, i32) {
    %c0_i32 = arith.constant 0 : i32
    %c0_i32_0 = arith.constant 0 : i32
    %c0_i32_1 = arith.constant 0 : i32
    return %c0_i32, %c0_i32_0 : i32, i32
  }
  func.func @transform_1(%arg0: i32) -> (i32, i32) {
    %c0_i32 = arith.constant 0 : i32
    %c0_i32_0 = arith.constant 0 : i32
    return %c0_i32, %arg0 : i32, i32
  }
  func.func @transform_2(%arg0: i32) -> (i32, i32) {
    %c0_i32 = arith.constant 0 : i32
    %c0_i32_0 = arith.constant 0 : i32
    return %c0_i32, %arg0 : i32, i32
  }
}

</mosaic_0001>

<llo_original>
// kernel: gpt_final_linear_t.1
$region0: #{gpt_final_linear_t.1}
  #allocation0 [shape = 'u32[]', space=smem, size = 0x4, offset = 0x4, fixed_abs, tag = 'smem constant byte address 0x4 - core index']
  #allocation1 [shape = 'u32[144,128]{1,0:T(1,128)}', space=vmem, size = 0x12000, scoped, tag = 'internal scratch']
  %s0 = inlined_call_operand.vmem [shape: f32[8,1], index: 0, kind: input, shape index: {}]
  %s1 = inlined_call_operand.hbm [shape: f32[8,512], index: 1, kind: input, shape index: {}]
  %s2 = inlined_call_operand.hbm [shape: f32[1,512], index: 2, kind: output, shape index: {}]
  %s3 = sld [smem:[#allocation0]]
  $region22: #{gpt_final_linear_t.1} parent=0
    _
  %s5 = ssub.s32 1, %s3
  %s6 = scalar_select 0, %s5, %s3
  $region1: #{gpt_final_linear_t.1} parent=0
    #allocation2 [shape = 'u8[16384]{0}', space=vmem, size = 0x4000, scoped, tag = 'input window, operand 1, single buffered']
    #allocation3 [shape = 's32[1]{0}', space=sflag, size = 0x4, scoped, tag = 'scoped memory for gpt_final_linear_t.1']
    #allocation4 [shape = 's32[1]{0}', space=sflag, size = 0x4, scoped, tag = 'scoped memory for gpt_final_linear_t.1']
    #allocation5 [shape = 'u8[2048]{0}', space=vmem, size = 0x800, scoped, tag = 'output window, operand 0, single buffered']
    %7 = vsyncpa [#allocation3], 0
    %8 = vsyncpa [#allocation4], 0
    // Predicated region
    $region2: #{gpt_final_linear_t.1} parent=1 // pred_check
      _
    $region3: #{gpt_final_linear_t.1} parent=1 // pred_check_branch
      %10 = sbr.rel (0) target = $region5
    $region4: #{gpt_final_linear_t.1} parent=1 // pred_region
      _
    $region5: #{gpt_final_linear_t.1} parent=1 // pred_fallthru
      _
    // Predicated region
    $region6: #{gpt_final_linear_t.1} parent=1 // pred_check
      _
    $region7: #{gpt_final_linear_t.1} parent=1 // pred_check_branch
      %12 = sbr.rel (0) target = $region9
    $region8: #{gpt_final_linear_t.1} parent=1 // pred_region
      %s14 = ssub.s32 512, 512
      %15 = vsyncadd [#allocation3], %s14
      %s17 = sshll.u32 [#allocation2], 4
      %s18 = int_to_ptr.vmem [resolvable:$true] %s17
      %20 = dma.hbm_to_vmem [thread:$0]  %s1, 512, %s18, [#allocation3]
    $region9: #{gpt_final_linear_t.1} parent=1 // pred_fallthru
      _
    // Predicated region
    $region10: #{gpt_final_linear_t.1} parent=1 // pred_check
      _
    $region11: #{gpt_final_linear_t.1} parent=1 // pred_check_branch
      %22 = sbr.rel (0) target = $region13
    $region12: #{gpt_final_linear_t.1} parent=1 // pred_region
      %23 = dma.done [#allocation3], 512
    $region13: #{gpt_final_linear_t.1} parent=1 // pred_fallthru
      _
    %v24 = vld [vmem:[#allocation2] sm:$0xff]
    %v25 = vld [vmem:[#allocation2 + $0x8] sm:$0xff]
    %v26 = vld [vmem:[#allocation2 + $0x10] sm:$0xff]
    %v27 = vld [vmem:[#allocation2 + $0x18] sm:$0xff]
    %v28 = vld [vmem:[%s0] sm:$0xff]
    %30 = vset.pattern.permute.xlu0 0
    %31 = vperm.xlu0 %30, %v28
    %v32 = vpop.permute.xlu0 %31
    %v34 = vmul.f32 %v24, %v32
    %v35 = vmul.f32 %v25, %v32
    %v36 = vmul.f32 %v26, %v32
    %v37 = vmul.f32 %v27, %v32
    %v38 = vrot.slane %v34, 4
    %v39 = vadd.f32 %v34, %v38
    %v40 = vrot.slane %v39, 2
    %v41 = vadd.f32 %v39, %v40
    %v42 = vrot.slane %v41, 1
    %v43 = vadd.f32 %v41, %v42
    %v44 = vrot.slane %v35, 4
    %v45 = vadd.f32 %v35, %v44
    %v46 = vrot.slane %v45, 2
    %v47 = vadd.f32 %v45, %v46
    %v48 = vrot.slane %v47, 1
    %v49 = vadd.f32 %v47, %v48
    %v50 = vrot.slane %v36, 4
    %v51 = vadd.f32 %v36, %v50
    %v52 = vrot.slane %v51, 2
    %v53 = vadd.f32 %v51, %v52
    %v54 = vrot.slane %v53, 1
    %v55 = vadd.f32 %v53, %v54
    %v56 = vrot.slane %v37, 4
    %v57 = vadd.f32 %v37, %v56
    %v58 = vrot.slane %v57, 2
    %v59 = vadd.f32 %v57, %v58
    %v60 = vrot.slane %v59, 1
    %v61 = vadd.f32 %v59, %v60
    %v66 = vcombine.low %v43, %v49
    %v67 = vcombine.low %v55, %v61
    %v69 = vunpack.c.l.s4 1966171168
    %v70 = vunpack.c.0.s8 %v69
    %v71 = vlaneseq
    %v72 = vshrl.u32 %v71, 7
    %v73 = vsub.s32 %v70, %v72
    %v74 = vrot.slane %v66, %v73
    %v76 = vunpack.c.l.s4 1966171168
    %v77 = vunpack.c.0.s8 %v76
    %v78 = vlaneseq
    %v79 = vshrl.u32 %v78, 7
    %v80 = vsub.s32 %v77, %v79
    %v81 = vrot.slane %v67, %v80
    %v82 = vcombine.low %v74, %v81
    %v84 = vunpack.c.l.s4 1966171168
    %v85 = vunpack.c.0.s8 %v84
    %v86 = vlaneseq
    %v87 = vshrl.u32 %v86, 7
    %v88 = vsub.s32 %v85, %v87
    %v89 = vrot.slane %v82, %v88
    %v91 = vlaneseq
    %vm92 = vcmp.ge.s32.totalorder %v91, 0
    %vm93 = vcmp.lt.s32.totalorder %v91, 512
    %vm94 = vmand %vm92, %vm93
    %95 = vst.msk [vmem:[#allocation5] sm:$0xf] %vm94, %v89
    // Predicated region
    $region14: #{gpt_final_linear_t.1} parent=1 // pred_check
      _
    $region15: #{gpt_final_linear_t.1} parent=1 // pred_check_branch
      %97 = sbr.rel (0) target = $region17
    $region16: #{gpt_final_linear_t.1} parent=1 // pred_region
      %s99 = ssub.s32 64, 64
      %100 = vsyncadd [#allocation4], %s99
      %s102 = sshll.u32 [#allocation5], 4
      %s103 = int_to_ptr.vmem [resolvable:$true] %s102
      %105 = dma.vmem_to_hbm [thread:$0]  %s103, 64, %s2, [#allocation4]
    $region17: #{gpt_final_linear_t.1} parent=1 // pred_fallthru
      _
    // Predicated region
    $region18: #{gpt_final_linear_t.1} parent=1 // pred_check
      _
    $region19: #{gpt_final_linear_t.1} parent=1 // pred_check_branch
      %107 = sbr.rel (0) target = $region21
    $region20: #{gpt_final_linear_t.1} parent=1 // pred_region
      %108 = dma.done [#allocation4], 64
    $region21: #{gpt_final_linear_t.1} parent=1 // pred_fallthru
      _
    %109 = vsyncpa [#allocation3], 1
    %110 = vsyncpa [#allocation4], 1

</llo_original>
